<compile_context>
chip_gen: v7x
topology: tpu7x:2x2x1
jax: 0.10.0
libtpu: 0.0.40
codegen_flags: <defaults>
</compile_context>

<pallas_src>
import jax
import jax.numpy as jnp
from jax import lax
from jax.experimental import pallas as pl
from jax.experimental.pallas import tpu as pltpu


# --------------------------------------------------------------------------------------
# Kernel 1: precompute input-side gates  gx = x @ W_ih + b   (one big matmul, tiled rows)
# --------------------------------------------------------------------------------------
def gates_x_kernel(x_ref, wih_ref, b_ref, gx_ref):
    gx_ref[...] = (
        jnp.dot(x_ref[...], wih_ref[...], preferred_element_type=jnp.float32)
        + b_ref[...]
    ).astype(gx_ref.dtype)


# --------------------------------------------------------------------------------------
# Kernel 2: sequential LSTM recurrence, time-blocked with an unrolled inner loop
# --------------------------------------------------------------------------------------
def lstm_rec_kernel(gx_ref, whh_ref, hT_ref, h_sc, c_sc):
    tb = pl.program_id(1)  # time-block index (axis 0 is the parallel batch-block axis)

    @pl.when(tb == 0)
    def _():
        h_sc[...] = jnp.zeros_like(h_sc)
        c_sc[...] = jnp.zeros_like(c_sc)

    whh = whh_ref[...]            # (H, 4H), loaded once per grid step, stays hot
    H = h_sc.shape[-1]
    TT = gx_ref.shape[0]          # time steps in this block (static)

    def step(t, carry):
        h, c = carry
        # Only the recurrent matmul remains per step; x-side gates + bias precomputed.
        gates = gx_ref[t] + jnp.dot(h, whh, preferred_element_type=jnp.float32)
        # H is a multiple of 128 here, so each gate slice is 128-lane aligned.
        i_g = jax.nn.sigmoid(gates[:, 0 * H:1 * H])
        f_g = jax.nn.sigmoid(gates[:, 1 * H:2 * H])
        g_g = jnp.tanh(gates[:, 2 * H:3 * H])
        o_g = jax.nn.sigmoid(gates[:, 3 * H:4 * H])
        c_new = f_g * c + i_g * g_g
        h_new = o_g * jnp.tanh(c_new)
        return h_new, c_new

    # Fully unrolled so the LLO scheduler sees the whole block of TT steps.
    h, c = lax.fori_loop(0, TT, step, (h_sc[...], c_sc[...]), unroll=True)
    h_sc[...] = h
    c_sc[...] = c
    # Output block index only depends on the batch block, so it stays resident across
    # the time axis and is written back to HBM once per batch block with the final h.
    hT_ref[...] = h.astype(hT_ref.dtype)


# --------------------------------------------------------------------------------------
# Kernel 3: final projection + ReLU (runs once, outside the recurrence)
# --------------------------------------------------------------------------------------
def proj_relu_kernel(h_ref, wp_ref, bp_ref, out_ref):
    y = jnp.dot(h_ref[...], wp_ref[...], preferred_element_type=jnp.float32) + bp_ref[...]
    out_ref[...] = jnp.maximum(y, 0.0).astype(out_ref.dtype)


def _pick(n, candidates):
    for c in candidates:
        if n % c == 0:
            return c
    return n


def lstm_forward(x, params):
    """x: (B, T, input_dim) float32, batch-first (matches the PyTorch module)."""
    w_ih, w_hh, b, w_proj, b_proj = params
    B, T, D = x.shape
    H = w_hh.shape[0]
    E = w_proj.shape[1]

    # Pad batch to a multiple of 8 (f32 sublane); padded rows are sliced off at the end.
    Bp = max(8, ((B + 7) // 8) * 8)
    if Bp != B:
        x = jnp.pad(x, ((0, Bp - B), (0, 0), (0, 0)))

    # Time-major, flattened rows for the big input-side matmul.
    x_rows = jnp.transpose(x, (1, 0, 2)).reshape(T * Bp, D)   # (T*Bp, D)

    # ---- 1) precompute gx = x @ W_ih + b  ------------------------------------------
    rows = T * Bp
    tm = _pick(rows, (512, 256, 128, 64, 32, 16, 8))
    gx = pl.pallas_call(
        gates_x_kernel,
        out_shape=jax.ShapeDtypeStruct((rows, 4 * H), jnp.float32),
        grid_spec=pltpu.PrefetchScalarGridSpec(
            num_scalar_prefetch=0,
            grid=(rows // tm,),
            in_specs=[
                pl.BlockSpec((tm, D), lambda i: (i, 0)),
                pl.BlockSpec((D, 4 * H), lambda i: (0, 0),
                             pipeline_mode=pl.Buffered(1)),   # constant block: single-buffer
                pl.BlockSpec((1, 4 * H), lambda i: (0, 0),
                             pipeline_mode=pl.Buffered(1)),
            ],
            out_specs=pl.BlockSpec((tm, 4 * H), lambda i: (i, 0)),
        ),
        compiler_params=pltpu.CompilerParams(dimension_semantics=("parallel",)),
    )(x_rows, w_ih, b)
    gx = gx.reshape(T, Bp, 4 * H)   # row-major no-op reshape

    # ---- 2) sequential recurrence, time-blocked ------------------------------------
    TB = _pick(Bp, (256, 128, 64, 32, 16, 8))   # batch tile
    TT = _pick(T, (32, 16, 8, 4, 2, 1))         # time steps per grid step (unrolled)
    nB, nT = Bp // TB, T // TT

    hT = pl.pallas_call(
        lstm_rec_kernel,
        out_shape=jax.ShapeDtypeStruct((Bp, H), jnp.float32),
        grid_spec=pltpu.PrefetchScalarGridSpec(
            num_scalar_prefetch=0,
            grid=(nB, nT),
            in_specs=[
                pl.BlockSpec((TT, TB, 4 * H), lambda bb, tb: (tb, bb, 0)),   # gx block
                pl.BlockSpec((H, 4 * H), lambda bb, tb: (0, 0),
                             pipeline_mode=pl.Buffered(1)),                  # W_hh, resident
            ],
            out_specs=pl.BlockSpec((TB, H), lambda bb, tb: (bb, 0)),
            scratch_shapes=[
                pltpu.VMEM((TB, H), jnp.float32),   # h state (persists across time blocks)
                pltpu.VMEM((TB, H), jnp.float32),   # c state
            ],
        ),
        compiler_params=pltpu.CompilerParams(
            dimension_semantics=("parallel", "arbitrary"),  # batch parallel, time sequential
        ),
    )(gx, w_hh)

    # ---- 3) projection + ReLU (dropout p=0 is the identity) ------------------------
    out = pl.pallas_call(
        proj_relu_kernel,
        out_shape=jax.ShapeDtypeStruct((Bp, E), jnp.float32),
        grid_spec=pltpu.PrefetchScalarGridSpec(
            num_scalar_prefetch=0,
            grid=(1,),
            in_specs=[
                pl.BlockSpec((Bp, H), lambda i: (0, 0)),
                pl.BlockSpec((H, E), lambda i: (0, 0)),
                pl.BlockSpec((1, E), lambda i: (0, 0)),
            ],
            out_specs=pl.BlockSpec((Bp, E), lambda i: (0, 0)),
        ),
    )(hT, w_proj, b_proj)

    return out[:B]


def lstm_forward_ref(x, params):
    """Pure-JAX reference (PyTorch nn.LSTM semantics) for verification."""
    w_ih, w_hh, b, w_proj, b_proj = params
    B = x.shape[0]
    H = w_hh.shape[0]

    def step(carry, x_t):
        h, c = carry
        gates = x_t @ w_ih + h @ w_hh + b[0]
        i = jax.nn.sigmoid(gates[:, 0 * H:1 * H])
        f = jax.nn.sigmoid(gates[:, 1 * H:2 * H])
        g = jnp.tanh(gates[:, 2 * H:3 * H])
        o = jax.nn.sigmoid(gates[:, 3 * H:4 * H])
        c = f * c + i * g
        h = o * jnp.tanh(c)
        return (h, c), None

    h0 = jnp.zeros((B, H), jnp.float32)
    c0 = jnp.zeros((B, H), jnp.float32)
    (hT, _), _ = jax.lax.scan(step, (h0, c0), jnp.transpose(x, (1, 0, 2)))
    return jnp.maximum(hT @ w_proj + b_proj[0], 0.0)


def init_params(key, input_dim, hidden_dim, embed_dim):
    """Deterministic init, same shapes as nn.LSTM/nn.Linear (weights stored transposed)."""
    k = jax.random.split(key, 6)
    s_l = 1.0 / jnp.sqrt(hidden_dim)
    w_ih = jax.random.uniform(k[0], (input_dim, 4 * hidden_dim), jnp.float32, -s_l, s_l)
    w_hh = jax.random.uniform(k[1], (hidden_dim, 4 * hidden_dim), jnp.float32, -s_l, s_l)
    b_ih = jax.random.uniform(k[2], (1, 4 * hidden_dim), jnp.float32, -s_l, s_l)
    b_hh = jax.random.uniform(k[3], (1, 4 * hidden_dim), jnp.float32, -s_l, s_l)
    b = b_ih + b_hh
    s_p = 1.0 / jnp.sqrt(hidden_dim)
    w_proj = jax.random.uniform(k[4], (hidden_dim, embed_dim), jnp.float32, -s_p, s_p)
    b_proj = jax.random.uniform(k[5], (1, embed_dim), jnp.float32, -s_p, s_p)
    return (w_ih, w_hh, b, w_proj, b_proj)


if __name__ == "__main__":
    # hidden_dim=128 is the nn.Module default and keeps gate slices 128-lane aligned.
    B, T, INPUT_DIM = 2, 8, 16
    HIDDEN_DIM, EMBED_DIM = 128, 8

    key = jax.random.PRNGKey(0)
    kx, kp = jax.random.split(key)
    x = jax.random.normal(kx, (B, T, INPUT_DIM), jnp.float32)
    params = init_params(kp, INPUT_DIM, HIDDEN_DIM, EMBED_DIM)

    out = lstm_forward(x, params)
    out = jax.block_until_ready(out)

    ref = lstm_forward_ref(x, params)
    assert out.shape == (B, EMBED_DIM)
    assert jnp.allclose(out, ref, atol=1e-5, rtol=1e-5), "mismatch vs reference"

    print("KERNEL_OK")
</pallas_src>

<mosaic_0001>
module attributes {stable_mosaic.version = 11 : i64} {
  func.func @gates_x_kernel(%arg0: i32, %arg1: memref<64x16xf32, #tpu.memory_space<vmem>>, %arg2: memref<16x512xf32, #tpu.memory_space<vmem>>, %arg3: memref<1x512xf32, #tpu.memory_space<vmem>>, %arg4: memref<64x512xf32, #tpu.memory_space<vmem>>) attributes {dimension_semantics = [#tpu.dimension_semantics<parallel>], iteration_bounds = array<i64: 1>, scalar_prefetch = 0 : i64, scratch_operands = 0 : i64, tpu.core_type = #tpu.core_type<tc>, window_params = [{transform_indices = @transform_0, window_bounds = array<i64: 64, 16>}, {pipeline_mode = #tpu.pipeline_mode<synchronous>, transform_indices = @transform_1, window_bounds = array<i64: 16, 512>}, {pipeline_mode = #tpu.pipeline_mode<synchronous>, transform_indices = @transform_2, window_bounds = array<i64: 1, 512>}, {transform_indices = @transform_3, window_bounds = array<i64: 64, 512>}]} {
    %c0 = arith.constant 0 : index
    %c0_0 = arith.constant 0 : index
    %0 = vector.load %arg1[%c0, %c0_0] : memref<64x16xf32, #tpu.memory_space<vmem>>, vector<64x16xf32>
    %c0_1 = arith.constant 0 : index
    %c0_2 = arith.constant 0 : index
    %1 = vector.load %arg2[%c0_1, %c0_2] : memref<16x512xf32, #tpu.memory_space<vmem>>, vector<16x512xf32>
    %cst = arith.constant dense<0.000000e+00> : vector<64x512xf32>
    %2 = tpu.matmul %0, %1, %cst {dimension_numbers = #tpu.dot_dimension_numbers<[1], [0], [0], [1], [0, 0, 1, 1], [], []>} : vector<64x16xf32>, vector<16x512xf32>, vector<64x512xf32> -> vector<64x512xf32>
    %c0_3 = arith.constant 0 : index
    %c0_4 = arith.constant 0 : index
    %3 = vector.load %arg3[%c0_3, %c0_4] : memref<1x512xf32, #tpu.memory_space<vmem>>, vector<1x512xf32>
    %4 = vector.broadcast %3 : vector<1x512xf32> to vector<64x512xf32>
    %5 = arith.addf %2, %4 : vector<64x512xf32>
    %c0_5 = arith.constant 0 : index
    %c0_6 = arith.constant 0 : index
    %6 = vector.load %arg4[%c0_5, %c0_6] : memref<64x512xf32, #tpu.memory_space<vmem>>, vector<64x512xf32>
    tpu.vector_store %arg4[%c0_5, %c0_6], %5 {strides = array<i32>} : memref<64x512xf32, #tpu.memory_space<vmem>>, vector<64x512xf32>,
    return
  }
  func.func @transform_0(%arg0: i32) -> (i32, i32) {
    %c0_i32 = arith.constant 0 : i32
    %c0_i32_0 = arith.constant 0 : i32
    return %arg0, %c0_i32 : i32, i32
  }
  func.func @transform_1(%arg0: i32) -> (i32, i32) {
    %c0_i32 = arith.constant 0 : i32
    %c0_i32_0 = arith.constant 0 : i32
    %c0_i32_1 = arith.constant 0 : i32
    return %c0_i32, %c0_i32_0 : i32, i32
  }
  func.func @transform_2(%arg0: i32) -> (i32, i32) {
    %c0_i32 = arith.constant 0 : i32
    %c0_i32_0 = arith.constant 0 : i32
    %c0_i32_1 = arith.constant 0 : i32
    return %c0_i32, %c0_i32_0 : i32, i32
  }
  func.func @transform_3(%arg0: i32) -> (i32, i32) {
    %c0_i32 = arith.constant 0 : i32
    %c0_i32_0 = arith.constant 0 : i32
    return %arg0, %c0_i32 : i32, i32
  }
}

</mosaic_0001>

<llo_original>
// kernel: tpu_custom_call.1
$region0: #{tpu_custom_call.1}
  #allocation0 [shape = 'u32[]', space=smem, size = 0x4, offset = 0x4, fixed_abs, tag = 'smem constant byte address 0x4 - core index']
  #allocation1 [shape = 'u32[144,128]{1,0:T(1,128)}', space=vmem, size = 0x12000, scoped, tag = 'internal scratch']
  %s0 = inlined_call_operand.vmem [shape: f32[64,16], index: 0, kind: input, shape index: {}]
  %s1 = inlined_call_operand.vmem [shape: f32[16,512], index: 1, kind: input, shape index: {}]
  %s2 = inlined_call_operand.vmem [shape: f32[1,512], index: 2, kind: input, shape index: {}]
  %s3 = inlined_call_operand.hbm [shape: f32[64,512], index: 3, kind: output, shape index: {}]
  %s4 = sld [smem:[#allocation0]]
  $region22: #{tpu_custom_call.1} parent=0
    _
  %s6 = ssub.s32 1, %s4
  %s7 = scalar_select 0, %s6, %s4
  $region1: #{tpu_custom_call.1} parent=0
    #allocation2 [shape = 'u8[131072]{0}', space=vmem, size = 0x20000, scoped, tag = 'output window, operand 0, single buffered']
    #allocation3 [shape = 's32[1]{0}', space=sflag, size = 0x4, scoped, tag = 'scoped memory for tpu_custom_call.1']
    %8 = vsyncpa [#allocation3], 0
    // Predicated region
    $region2: #{tpu_custom_call.1} parent=1 // pred_check
      _
    $region3: #{tpu_custom_call.1} parent=1 // pred_check_branch
      %10 = sbr.rel (0) target = $region5
    $region4: #{tpu_custom_call.1} parent=1 // pred_region
      _
    $region5: #{tpu_custom_call.1} parent=1 // pred_fallthru
      _
    // Predicated region
    $region6: #{tpu_custom_call.1} parent=1 // pred_check
      _
    $region7: #{tpu_custom_call.1} parent=1 // pred_check_branch
      %12 = sbr.rel (0) target = $region9
    $region8: #{tpu_custom_call.1} parent=1 // pred_region
      _
    $region9: #{tpu_custom_call.1} parent=1 // pred_fallthru
      _
    // Predicated region
    $region10: #{tpu_custom_call.1} parent=1 // pred_check
      _
    $region11: #{tpu_custom_call.1} parent=1 // pred_check_branch
      %14 = sbr.rel (0) target = $region13
    $region12: #{tpu_custom_call.1} parent=1 // pred_region
      _
    $region13: #{tpu_custom_call.1} parent=1 // pred_fallthru
      _
    %v15 = vld [vmem:[%s0] sm:$0xff]
    %v16 = vld [vmem:[%s0 + $0x8] sm:$0xff]
    %v17 = vld [vmem:[%s0 + $0x10] sm:$0xff]
    %v18 = vld [vmem:[%s0 + $0x18] sm:$0xff]
    %v19 = vld [vmem:[%s0 + $0x20] sm:$0xff]
    %v20 = vld [vmem:[%s0 + $0x28] sm:$0xff]
    %v21 = vld [vmem:[%s0 + $0x30] sm:$0xff]
    %v22 = vld [vmem:[%s0 + $0x38] sm:$0xff]
    %v23 = vld [vmem:[%s1] sm:$0xff]
    %v24 = vld [vmem:[%s1 + $0x8] sm:$0xff]
    %v25 = vld [vmem:[%s1 + $0x10] sm:$0xff]
    %v26 = vld [vmem:[%s1 + $0x18] sm:$0xff]
    %v27 = vld [vmem:[%s1 + $0x20] sm:$0xff]
    %v28 = vld [vmem:[%s1 + $0x28] sm:$0xff]
    %v29 = vld [vmem:[%s1 + $0x30] sm:$0xff]
    %v30 = vld [vmem:[%s1 + $0x38] sm:$0xff]
    %v31 = vld [vmem:[%s2] sm:$0xf]
    %v33 = vlaneseq
    %v34 = vshrl.u32 %v33, 7
    %v35 = vsub.s32 0, %v34
    %v36 = vrot.slane %v31, %v35
    %v37 = vlaneseq
    %v38 = vshrl.u32 %v37, 7
    %v39 = vsub.s32 1, %v38
    %v40 = vrot.slane %v31, %v39
    %v41 = vlaneseq
    %v42 = vshrl.u32 %v41, 7
    %v43 = vsub.s32 2, %v42
    %v44 = vrot.slane %v31, %v43
    %v45 = vlaneseq
    %v46 = vshrl.u32 %v45, 7
    %v47 = vsub.s32 3, %v46
    %v48 = vrot.slane %v31, %v47
    %vm53 = vcmask 130048
    %v55 = vsel %vm53, %v15, 0
    %v58 = vsel %vm53, %v16, 0
    %v61 = vsel %vm53, %v17, 0
    %v64 = vsel %vm53, %v18, 0
    %v67 = vsel %vm53, %v19, 0
    %v70 = vsel %vm53, %v20, 0
    %v73 = vsel %vm53, %v21, 0
    %v76 = vsel %vm53, %v22, 0
    %78 = vmatprep.subr.mxu0 %v24
    %79 = vmatpush1.msra.mxu0 %v23
    %80 = vmatprep.subr.mxu0 %v28
    %81 = vmatpush1.msra.mxu0 %v27
    %82 = vmatprep.subr.mxu0 0.0
    %83 = vmatpush1.msra.mxu0 0.0
    %84 = vmatprep.subr.mxu0 0.0
    %85 = vmatpush1.msra.mxu0 0.0
    %86 = vmatprep.subr.mxu0 0.0
    %87 = vmatpush1.msra.mxu0 0.0
    %88 = vmatprep.subr.mxu0 0.0
    %89 = vmatpush1.msra.mxu0 0.0
    %90 = vmatprep.subr.mxu0 0.0
    %91 = vmatpush1.msra.mxu0 0.0
    %92 = vmatprep.subr.mxu0 0.0
    %93 = vmatpush1.msra.mxu0 0.0
    %94 = vmatprep.subr.mxu0 0.0
    %95 = vmatpush1.msra.mxu0 0.0
    %96 = vmatprep.subr.mxu0 0.0
    %97 = vmatpush1.msra.mxu0 0.0
    %98 = vmatprep.subr.mxu0 0.0
    %99 = vmatpush1.msra.mxu0 0.0
    %100 = vmatprep.subr.mxu0 0.0
    %101 = vmatpush1.msra.mxu0 0.0
    %102 = vmatprep.subr.mxu0 0.0
    %103 = vmatpush1.msra.mxu0 0.0
    %104 = vmatprep.subr.mxu0 0.0
    %105 = vmatpush1.msra.mxu0 0.0
    %106 = vmatprep.subr.mxu0 0.0
    %107 = vmatpush1.msra.mxu0 0.0
    %108 = vmatprep.subr.mxu0 0.0
    %109 = vmatpush1.msra.mxu0 0.0
    %110 = vmatprep.subr.mxu0 0.0
    %111 = vmatpush1.msra.mxu0 0.0
    %112 = vmatprep.subr.mxu0 0.0
    %113 = vmatpush1.msra.mxu0 0.0
    %114 = vmatprep.subr.mxu0 0.0
    %115 = vmatpush1.msra.mxu0 0.0
    %116 = vmatprep.subr.mxu0 0.0
    %117 = vmatpush1.msra.mxu0 0.0
    %118 = vmatprep.subr.mxu0 0.0
    %119 = vmatpush1.msra.mxu0 0.0
    %120 = vmatprep.subr.mxu0 0.0
    %121 = vmatpush1.msra.mxu0 0.0
    %122 = vmatprep.subr.mxu0 0.0
    %123 = vmatpush1.msra.mxu0 0.0
    %124 = vmatprep.subr.mxu0 0.0
    %125 = vmatpush1.msra.mxu0 0.0
    %126 = vmatprep.subr.mxu0 0.0
    %127 = vmatpush1.msra.mxu0 0.0
    %128 = vmatprep.subr.mxu0 0.0
    %129 = vmatpush1.msra.mxu0 0.0
    %130 = vmatprep.subr.mxu0 0.0
    %131 = vmatpush1.msra.mxu0 0.0
    %132 = vmatprep.subr.mxu0 0.0
    %133 = vmatpush1.msra.mxu0 0.0
    %134 = vmatprep.subr.mxu0 0.0
    %135 = vmatpush1.msra.mxu0 0.0
    %136 = vmatprep.subr.mxu0 0.0
    %137 = vmatpush1.msra.mxu0 0.0
    %138 = vmatprep.subr.mxu0 0.0
    %139 = vmatpush1.msra.mxu0 0.0
    %140 = vmatprep.subr.mxu0 0.0
    %141 = vmatpush1.msra.mxu0 0.0
    %142 = vmatprep.mubr.f32.mxu0 0.0
    %143 = vmatmul.mubr.f32.gmra.mrb[0].mxu0 %v55
    %v144 = vpop.f32.mrb[0].mxu0
    %v145 = vadd.f32 %v36, %v144
    %v146 = vpop.f32.mrb[0].mxu0
    %v147 = vadd.f32 %v40, %v146
    %148 = vmatprep.mubr.f32.mxu0 0.0
    %149 = vmatmul.mubr.f32.gmra.mrb[0].mxu0 %v58
    %v150 = vpop.f32.mrb[0].mxu0
    %v151 = vadd.f32 %v36, %v150
    %v152 = vpop.f32.mrb[0].mxu0
    %v153 = vadd.f32 %v40, %v152
    %154 = vmatprep.mubr.f32.mxu0 0.0
    %155 = vmatmul.mubr.f32.gmra.mrb[0].mxu0 %v61
    %v156 = vpop.f32.mrb[0].mxu0
    %v157 = vadd.f32 %v36, %v156
    %v158 = vpop.f32.mrb[0].mxu0
    %v159 = vadd.f32 %v40, %v158
    %160 = vmatprep.mubr.f32.mxu0 0.0
    %161 = vmatmul.mubr.f32.gmra.mrb[0].mxu0 %v64
    %v162 = vpop.f32.mrb[0].mxu0
    %v163 = vadd.f32 %v36, %v162
    %v164 = vpop.f32.mrb[0].mxu0
    %v165 = vadd.f32 %v40, %v164
    %166 = vmatprep.mubr.f32.mxu0 0.0
    %167 = vmatmul.mubr.f32.gmra.mrb[0].mxu0 %v67
    %v168 = vpop.f32.mrb[0].mxu0
    %v169 = vadd.f32 %v36, %v168
    %v170 = vpop.f32.mrb[0].mxu0
    %v171 = vadd.f32 %v40, %v170
    %172 = vmatprep.mubr.f32.mxu0 0.0
    %173 = vmatmul.mubr.f32.gmra.mrb[0].mxu0 %v70
    %v174 = vpop.f32.mrb[0].mxu0
    %v175 = vadd.f32 %v36, %v174
    %v176 = vpop.f32.mrb[0].mxu0
    %v177 = vadd.f32 %v40, %v176
    %178 = vmatprep.mubr.f32.mxu0 0.0
    %179 = vmatmul.mubr.f32.gmra.mrb[0].mxu0 %v73
    %v180 = vpop.f32.mrb[0].mxu0
    %v181 = vadd.f32 %v36, %v180
    %v182 = vpop.f32.mrb[0].mxu0
    %v183 = vadd.f32 %v40, %v182
    %184 = vmatprep.mubr.f32.mxu0 0.0
    %185 = vmatmul.mubr.f32.gmra.mrb[0].mxu0 %v76
    %v186 = vpop.f32.mrb[0].mxu0
    %v187 = vadd.f32 %v36, %v186
    %v188 = vpop.f32.mrb[0].mxu0
    %v189 = vadd.f32 %v40, %v188
    %190 = vdwg.mxu0
    %191 = vmatprep.subr.mxu0 %v26
    %192 = vmatpush1.msra.mxu0 %v25
    %193 = vmatprep.subr.mxu0 %v30
    %194 = vmatpush1.msra.mxu0 %v29
    %195 = vmatprep.subr.mxu0 0.0
    %196 = vmatpush1.msra.mxu0 0.0
    %197 = vmatprep.subr.mxu0 0.0
    %198 = vmatpush1.msra.mxu0 0.0
    %199 = vmatprep.subr.mxu0 0.0
    %200 = vmatpush1.msra.mxu0 0.0
    %201 = vmatprep.subr.mxu0 0.0
    %202 = vmatpush1.msra.mxu0 0.0
    %203 = vmatprep.subr.mxu0 0.0
    %204 = vmatpush1.msra.mxu0 0.0
    %205 = vmatprep.subr.mxu0 0.0
    %206 = vmatpush1.msra.mxu0 0.0
    %207 = vmatprep.subr.mxu0 0.0
    %208 = vmatpush1.msra.mxu0 0.0
    %209 = vmatprep.subr.mxu0 0.0
    %210 = vmatpush1.msra.mxu0 0.0
    %211 = vmatprep.subr.mxu0 0.0
    %212 = vmatpush1.msra.mxu0 0.0
    %213 = vmatprep.subr.mxu0 0.0
    %214 = vmatpush1.msra.mxu0 0.0
    %215 = vmatprep.subr.mxu0 0.0
    %216 = vmatpush1.msra.mxu0 0.0
    %217 = vmatprep.subr.mxu0 0.0
    %218 = vmatpush1.msra.mxu0 0.0
    %219 = vmatprep.subr.mxu0 0.0
    %220 = vmatpush1.msra.mxu0 0.0
    %221 = vmatprep.subr.mxu0 0.0
    %222 = vmatpush1.msra.mxu0 0.0
    %223 = vmatprep.subr.mxu0 0.0
    %224 = vmatpush1.msra.mxu0 0.0
    %225 = vmatprep.subr.mxu0 0.0
    %226 = vmatpush1.msra.mxu0 0.0
    %227 = vmatprep.subr.mxu0 0.0
    %228 = vmatpush1.msra.mxu0 0.0
    %229 = vmatprep.subr.mxu0 0.0
    %230 = vmatpush1.msra.mxu0 0.0
    %231 = vmatprep.subr.mxu0 0.0
    %232 = vmatpush1.msra.mxu0 0.0
    %233 = vmatprep.subr.mxu0 0.0
    %234 = vmatpush1.msra.mxu0 0.0
    %235 = vmatprep.subr.mxu0 0.0
    %236 = vmatpush1.msra.mxu0 0.0
    %237 = vmatprep.subr.mxu0 0.0
    %238 = vmatpush1.msra.mxu0 0.0
    %239 = vmatprep.subr.mxu0 0.0
    %240 = vmatpush1.msra.mxu0 0.0
    %241 = vmatprep.subr.mxu0 0.0
    %242 = vmatpush1.msra.mxu0 0.0
    %243 = vmatprep.subr.mxu0 0.0
    %244 = vmatpush1.msra.mxu0 0.0
    %245 = vmatprep.subr.mxu0 0.0
    %246 = vmatpush1.msra.mxu0 0.0
    %247 = vmatprep.subr.mxu0 0.0
    %248 = vmatpush1.msra.mxu0 0.0
    %249 = vmatprep.subr.mxu0 0.0
    %250 = vmatpush1.msra.mxu0 0.0
    %251 = vmatprep.subr.mxu0 0.0
    %252 = vmatpush1.msra.mxu0 0.0
    %253 = vmatprep.subr.mxu0 0.0
    %254 = vmatpush1.msra.mxu0 0.0
    %255 = vmatprep.mubr.f32.mxu0 0.0
    %256 = vmatmul.mubr.f32.gmra.mrb[0].mxu0 %v55
    %v257 = vpop.f32.mrb[0].mxu0
    %v258 = vadd.f32 %v44, %v257
    %v259 = vpop.f32.mrb[0].mxu0
    %v260 = vadd.f32 %v48, %v259
    %261 = vmatprep.mubr.f32.mxu0 0.0
    %262 = vmatmul.mubr.f32.gmra.mrb[0].mxu0 %v58
    %v263 = vpop.f32.mrb[0].mxu0
    %v264 = vadd.f32 %v44, %v263
    %v265 = vpop.f32.mrb[0].mxu0
    %v266 = vadd.f32 %v48, %v265
    %267 = vmatprep.mubr.f32.mxu0 0.0
    %268 = vmatmul.mubr.f32.gmra.mrb[0].mxu0 %v61
    %v269 = vpop.f32.mrb[0].mxu0
    %v270 = vadd.f32 %v44, %v269
    %v271 = vpop.f32.mrb[0].mxu0
    %v272 = vadd.f32 %v48, %v271
    %273 = vmatprep.mubr.f32.mxu0 0.0
    %274 = vmatmul.mubr.f32.gmra.mrb[0].mxu0 %v64
    %v275 = vpop.f32.mrb[0].mxu0
    %v276 = vadd.f32 %v44, %v275
    %v277 = vpop.f32.mrb[0].mxu0
    %v278 = vadd.f32 %v48, %v277
    %279 = vmatprep.mubr.f32.mxu0 0.0
    %280 = vmatmul.mubr.f32.gmra.mrb[0].mxu0 %v67
    %v281 = vpop.f32.mrb[0].mxu0
    %v282 = vadd.f32 %v44, %v281
    %v283 = vpop.f32.mrb[0].mxu0
    %v284 = vadd.f32 %v48, %v283
    %285 = vmatprep.mubr.f32.mxu0 0.0
    %286 = vmatmul.mubr.f32.gmra.mrb[0].mxu0 %v70
    %v287 = vpop.f32.mrb[0].mxu0
    %v288 = vadd.f32 %v44, %v287
    %v289 = vpop.f32.mrb[0].mxu0
    %v290 = vadd.f32 %v48, %v289
    %291 = vmatprep.mubr.f32.mxu0 0.0
    %292 = vmatmul.mubr.f32.gmra.mrb[0].mxu0 %v73
    %v293 = vpop.f32.mrb[0].mxu0
    %v294 = vadd.f32 %v44, %v293
    %v295 = vpop.f32.mrb[0].mxu0
    %v296 = vadd.f32 %v48, %v295
    %297 = vmatprep.mubr.f32.mxu0 0.0
    %298 = vmatmul.mubr.f32.gmra.mrb[0].mxu0 %v76
    %v299 = vpop.f32.mrb[0].mxu0
    %v300 = vadd.f32 %v44, %v299
    %v301 = vpop.f32.mrb[0].mxu0
    %v302 = vadd.f32 %v48, %v301
    %303 = vdwg.mxu0
    %304 = vst [vmem:[#allocation2] sm:$0xff] %v145
    %305 = vst [vmem:[#allocation2 + $0x8] sm:$0xff] %v147
    %306 = vst [vmem:[#allocation2 + $0x10] sm:$0xff] %v258
    %307 = vst [vmem:[#allocation2 + $0x18] sm:$0xff] %v260
    %308 = vst [vmem:[#allocation2 + $0x20] sm:$0xff] %v151
    %309 = vst [vmem:[#allocation2 + $0x28] sm:$0xff] %v153
    %310 = vst [vmem:[#allocation2 + $0x30] sm:$0xff] %v264
    %311 = vst [vmem:[#allocation2 + $0x38] sm:$0xff] %v266
    %312 = vst [vmem:[#allocation2 + $0x40] sm:$0xff] %v157
    %313 = vst [vmem:[#allocation2 + $0x48] sm:$0xff] %v159
    %314 = vst [vmem:[#allocation2 + $0x50] sm:$0xff] %v270
    %315 = vst [vmem:[#allocation2 + $0x58] sm:$0xff] %v272
    %316 = vst [vmem:[#allocation2 + $0x60] sm:$0xff] %v163
    %317 = vst [vmem:[#allocation2 + $0x68] sm:$0xff] %v165
    %318 = vst [vmem:[#allocation2 + $0x70] sm:$0xff] %v276
    %319 = vst [vmem:[#allocation2 + $0x78] sm:$0xff] %v278
    %320 = vst [vmem:[#allocation2 + $0x80] sm:$0xff] %v169
    %321 = vst [vmem:[#allocation2 + $0x88] sm:$0xff] %v171
    %322 = vst [vmem:[#allocation2 + $0x90] sm:$0xff] %v282
    %323 = vst [vmem:[#allocation2 + $0x98] sm:$0xff] %v284
    %324 = vst [vmem:[#allocation2 + $0xa0] sm:$0xff] %v175
    %325 = vst [vmem:[#allocation2 + $0xa8] sm:$0xff] %v177
    %326 = vst [vmem:[#allocation2 + $0xb0] sm:$0xff] %v288
    %327 = vst [vmem:[#allocation2 + $0xb8] sm:$0xff] %v290
    %328 = vst [vmem:[#allocation2 + $0xc0] sm:$0xff] %v181
    %329 = vst [vmem:[#allocation2 + $0xc8] sm:$0xff] %v183
    %330 = vst [vmem:[#allocation2 + $0xd0] sm:$0xff] %v294
    %331 = vst [vmem:[#allocation2 + $0xd8] sm:$0xff] %v296
    %332 = vst [vmem:[#allocation2 + $0xe0] sm:$0xff] %v187
    %333 = vst [vmem:[#allocation2 + $0xe8] sm:$0xff] %v189
    %334 = vst [vmem:[#allocation2 + $0xf0] sm:$0xff] %v300
    %335 = vst [vmem:[#allocation2 + $0xf8] sm:$0xff] %v302
    // Predicated region
    $region14: #{tpu_custom_call.1} parent=1 // pred_check
      _
    $region15: #{tpu_custom_call.1} parent=1 // pred_check_branch
      %337 = sbr.rel (0) target = $region17
    $region16: #{tpu_custom_call.1} parent=1 // pred_region
      %s339 = ssub.s32 4096, 4096
      %340 = vsyncadd [#allocation3], %s339
      %s341 = sshll.u32 [#allocation2], 4
      %s342 = int_to_ptr.vmem [resolvable:$true] %s341
      %347 = dma.vmem_to_hbm [thread:$0]  %s342, 4096, %s3, [#allocation3], 512, 512, 32
    $region17: #{tpu_custom_call.1} parent=1 // pred_fallthru
      _
    // Predicated region
    $region18: #{tpu_custom_call.1} parent=1 // pred_check
      _
    $region19: #{tpu_custom_call.1} parent=1 // pred_check_branch
      %349 = sbr.rel (0) target = $region21
    $region20: #{tpu_custom_call.1} parent=1 // pred_region
      %350 = dma.done [#allocation3], 4096
    $region21: #{tpu_custom_call.1} parent=1 // pred_fallthru
      _
    %351 = vsyncpa [#allocation3], 1

</llo_original>
